<compile_context>
chip_gen: v6e
topology: v6e:2x2x1
jax: 0.10.0
libtpu: 0.0.40
codegen_flags: <defaults>
</compile_context>

<pallas_src>
import jax
import jax.numpy as jnp
from jax import lax
from jax.experimental import pallas as pl
from jax.experimental.pallas import tpu as pltpu


_LANE = 128


def _round_up(x, m):
    return ((x + m - 1) // m) * m


def _sublane_multiple(dtype):
    # f32 -> 8, bf16 -> 16, int8/fp8 -> 32 (sub-32-bit dtypes pack along sublanes).
    return 8 * max(1, 4 // jnp.dtype(dtype).itemsize)


def _vmem_capacity_bytes():
    """Per-generation VMEM capacity; falls back to the v7x floor (64 MiB)."""
    try:
        info = pltpu.get_tpu_info()
        cap = getattr(info, "vmem_capacity_bytes", None)
        if cap:
            return int(cap)
    except Exception:
        pass
    return 64 * 1024 * 1024


# ---------------------------------------------------------------------------
# Kernels
# ---------------------------------------------------------------------------

def _make_fused_kernel(c_valid, c_pad, use_bf16_mxu):
    """Single-visit kernel: energy -> softmax -> apply, x resident in VMEM."""
    need_mask = c_pad != c_valid

    def kernel(gamma_ref, x_ref, output_ref, out_ref):
        x = x_ref[...]                                        # (c_pad, n_pad)
        lhs = x.astype(jnp.bfloat16) if use_bf16_mxu else x
        # E = x @ x^T (contract the spatial axis), f32 accumulation on the MXU.
        energy = lax.dot_general(
            lhs, lhs,
            dimension_numbers=(((1,), (1,)), ((), ())),
            preferred_element_type=jnp.float32)               # (c_pad, c_pad)
        if need_mask:
            # Padded channel columns must not receive softmax weight.
            col = lax.broadcasted_iota(jnp.int32, energy.shape, 1)
            energy = jnp.where(col < c_valid, energy, jnp.inf)
        # softmax(rowmax(E) - E) == exp(rowmin(E) - E) / sum(...): one reduction.
        e_min = jnp.min(energy, axis=-1, keepdims=True)
        pexp = jnp.exp(e_min - energy)                        # exp(-inf)=0 at masked cols
        attn = (pexp / jnp.sum(pexp, axis=-1, keepdims=True)).astype(lhs.dtype)
        out = jnp.dot(attn, lhs, preferred_element_type=jnp.float32)
        gamma = gamma_ref[0]
        output_ref[...] = (gamma * out + x.astype(jnp.float32)).astype(output_ref.dtype)
        out_ref[...] = out.astype(out_ref.dtype)

    return kernel


def _make_energy_kernel(use_bf16_mxu):
    """Streaming pass A: accumulate E[b] = x[b] @ x[b]^T over spatial tiles."""

    def kernel(x_ref, energy_ref):
        @pl.when(pl.program_id(1) == 0)
        def _init():
            energy_ref[...] = jnp.zeros_like(energy_ref)

        x = x_ref[...]                                        # (c_pad, tile_n)
        lhs = x.astype(jnp.bfloat16) if use_bf16_mxu else x
        energy_ref[...] += lax.dot_general(
            lhs, lhs,
            dimension_numbers=(((1,), (1,)), ((), ())),
            preferred_element_type=jnp.float32)

    return kernel


def _cam_apply_kernel(gamma_ref, attn_ref, x_ref, output_ref, out_ref):
    """Streaming pass B: out = A @ x_tile, output = gamma * out + x_tile."""
    x = x_ref[...]                                            # (c_pad, tile_n)
    out = jnp.dot(attn_ref[...], x.astype(attn_ref.dtype),
                  preferred_element_type=jnp.float32)
    gamma = gamma_ref[0]
    output_ref[...] = (gamma * out + x.astype(jnp.float32)).astype(output_ref.dtype)
    out_ref[...] = out.astype(out_ref.dtype)


# ---------------------------------------------------------------------------
# Wrapper
# ---------------------------------------------------------------------------

def cam_module(x, gamma, *, use_bf16_mxu=False, force_streaming=False, tile_n=None):
    """x: (B, C, H, W), gamma: (1,).  Returns (gamma*out + x, out) like CAM_Module."""
    B, C, H, W = x.shape
    N = H * W
    dtype = x.dtype
    itemsize = jnp.dtype(dtype).itemsize
    c_pad = _round_up(C, _sublane_multiple(dtype))
    n_pad_full = _round_up(N, _LANE)

    vmem_cap = _vmem_capacity_bytes()
    budget = (vmem_cap * 6) // 10          # leave headroom for compiler temporaries

    # Fused-path working set: double-buffered x + 2 outputs, f32 matmul/residual
    # temporaries, tiny CxC softmax intermediates.
    fused_bytes = (2 * 3 * c_pad * n_pad_full * itemsize
                   + 2 * c_pad * n_pad_full * 4
                   + 4 * c_pad * c_pad * 4)
    use_fused = (not force_streaming) and fused_bytes <= budget

    x_flat = x.reshape(B, C, N)
    mm_dtype = jnp.bfloat16 if use_bf16_mxu else dtype

    if use_fused:
        n_pad = n_pad_full
        if c_pad != C or n_pad != N:
            # Zero spatial padding is exact for the Gram matrix; padded channel
            # columns are masked out of the softmax inside the kernel.
            x_flat = jnp.pad(x_flat, ((0, 0), (0, c_pad - C), (0, n_pad - N)))
        vmem_limit = int(min(vmem_cap * 9 // 10,
                             max(32 << 20, fused_bytes + (8 << 20))))

        x_spec = pl.BlockSpec((None, c_pad, n_pad), lambda b: (b, 0, 0))
        o_spec = pl.BlockSpec((None, c_pad, n_pad), lambda b: (b, 0, 0))
        output_flat, out_flat = pl.pallas_call(
            _make_fused_kernel(C, c_pad, use_bf16_mxu),
            out_shape=(jax.ShapeDtypeStruct((B, c_pad, n_pad), dtype),
                       jax.ShapeDtypeStruct((B, c_pad, n_pad), dtype)),
            grid_spec=pltpu.PrefetchScalarGridSpec(
                num_scalar_prefetch=0,
                grid=(B,),
                in_specs=[
                    pl.BlockSpec(memory_space=pltpu.MemorySpace.SMEM),   # gamma
                    x_spec,                                              # x
                ],
                out_specs=[o_spec, o_spec],
            ),
            compiler_params=pltpu.CompilerParams(
                dimension_semantics=("parallel",),
                vmem_limit_bytes=vmem_limit),
        )(gamma, x_flat)
    else:
        if tile_n is None:
            # Subtract the pinned / double-buffered CxC blocks before sizing the
            # spatial tile; keep it a lane multiple and take the biggest that fits.
            avail = budget - 2 * c_pad * c_pad * (4 + itemsize) - (4 << 20)
            per_unit = c_pad * (6 * itemsize + 8)   # x + 2 outs (2-deep) + f32 temps
            avail = max(avail, per_unit * _LANE)
            tile_n = min(n_pad_full, (avail // per_unit) // _LANE * _LANE)
        tile_n = max(_LANE, _round_up(int(tile_n), _LANE))
        tile_n = min(tile_n, n_pad_full)
        n_pad = _round_up(N, tile_n)
        n_tiles = n_pad // tile_n
        if c_pad != C or n_pad != N:
            x_flat = jnp.pad(x_flat, ((0, 0), (0, c_pad - C), (0, n_pad - N)))

        stream_bytes = (6 * c_pad * tile_n * itemsize + 2 * c_pad * tile_n * 4
                        + 2 * c_pad * c_pad * (4 + itemsize))
        vmem_limit = int(min(vmem_cap * 9 // 10,
                             max(32 << 20, stream_bytes + (8 << 20))))

        # Pass A: accumulate the per-batch Gram matrix into its pinned output block.
        energy = pl.pallas_call(
            _make_energy_kernel(use_bf16_mxu),
            out_shape=jax.ShapeDtypeStruct((B, c_pad, c_pad), jnp.float32),
            grid_spec=pltpu.PrefetchScalarGridSpec(
                num_scalar_prefetch=0,
                grid=(B, n_tiles),
                in_specs=[pl.BlockSpec((None, c_pad, tile_n), lambda b, t: (b, 0, t))],
                out_specs=pl.BlockSpec((None, c_pad, c_pad), lambda b, t: (b, 0, 0)),
            ),
            compiler_params=pltpu.CompilerParams(
                dimension_semantics=("parallel", "arbitrary"),
                vmem_limit_bytes=vmem_limit),
        )(x_flat)

        # Channel softmax on the tiny (B, C, C) energy in plain JAX
        # (softmax(rowmax(E) - E) == exp(rowmin(E) - E) / sum).
        e = energy[:, :C, :C]
        e_min = jnp.min(e, axis=-1, keepdims=True)
        pexp = jnp.exp(e_min - e)
        attn = pexp / jnp.sum(pexp, axis=-1, keepdims=True)
        attn = jnp.pad(attn, ((0, 0), (0, c_pad - C), (0, c_pad - C))).astype(mm_dtype)

        # Pass B: apply attention + gamma residual; both grid axes fully parallel,
        # each lane-dense output tile written exactly once.
        output_flat, out_flat = pl.pallas_call(
            _cam_apply_kernel,
            out_shape=(jax.ShapeDtypeStruct((B, c_pad, n_pad), dtype),
                       jax.ShapeDtypeStruct((B, c_pad, n_pad), dtype)),
            grid_spec=pltpu.PrefetchScalarGridSpec(
                num_scalar_prefetch=0,
                grid=(B, n_tiles),
                in_specs=[
                    pl.BlockSpec(memory_space=pltpu.MemorySpace.SMEM),            # gamma
                    pl.BlockSpec((None, c_pad, c_pad), lambda b, t: (b, 0, 0)),   # attn
                    pl.BlockSpec((None, c_pad, tile_n), lambda b, t: (b, 0, t)),  # x
                ],
                out_specs=[
                    pl.BlockSpec((None, c_pad, tile_n), lambda b, t: (b, 0, t)),
                    pl.BlockSpec((None, c_pad, tile_n), lambda b, t: (b, 0, t)),
                ],
            ),
            compiler_params=pltpu.CompilerParams(
                dimension_semantics=("parallel", "parallel"),
                vmem_limit_bytes=vmem_limit),
        )(gamma, attn, x_flat)

    output = output_flat[:, :C, :N].reshape(B, C, H, W)
    out = out_flat[:, :C, :N].reshape(B, C, H, W)
    return output, out


# ---------------------------------------------------------------------------
# Reference + self-test
# ---------------------------------------------------------------------------

def _cam_reference(x, gamma):
    """Pure-JAX reference mirroring the PyTorch forward (f32, highest precision)."""
    B, C, H, W = x.shape
    N = H * W
    hp = jax.lax.Precision.HIGHEST
    pq = x.reshape(B, C, N).astype(jnp.float32)
    energy = jnp.einsum("bcn,bdn->bcd", pq, pq, precision=hp)
    energy_new = jnp.max(energy, axis=-1, keepdims=True) - energy
    attention = jax.nn.softmax(energy_new, axis=-1)
    out = jnp.einsum("bcd,bdn->bcn", attention, pq, precision=hp).reshape(B, C, H, W)
    output = gamma[0] * out + x.astype(jnp.float32)
    return output.astype(x.dtype), out.astype(x.dtype)


if __name__ == "__main__":
    key = jax.random.PRNGKey(0)
    B, C, H, W = 2, 4, 16, 16
    # Modest-scale activations keep the channel softmax well conditioned so the
    # comparison against the f32 reference is meaningful at tight tolerances.
    x = 0.25 * jax.random.normal(key, (B, C, H, W), dtype=jnp.float32)

    gamma0 = jnp.zeros((1,), dtype=jnp.float32)     # CAM_Module.__init__ default
    gamma1 = jnp.full((1,), 0.5, dtype=jnp.float32)

    tol = dict(atol=5e-3, rtol=5e-3)

    # Fused single-visit path (default for shapes that fit VMEM), gamma = 0.
    out_a = cam_module(x, gamma0)
    jax.block_until_ready(out_a)
    ref_a = _cam_reference(x, gamma0)
    assert jnp.allclose(out_a[0], ref_a[0], **tol)
    assert jnp.allclose(out_a[1], ref_a[1], **tol)

    # Fused path, non-zero gamma (validates the residual scale).
    out_b = cam_module(x, gamma1)
    jax.block_until_ready(out_b)
    ref_b = _cam_reference(x, gamma1)
    assert jnp.allclose(out_b[0], ref_b[0], **tol)
    assert jnp.allclose(out_b[1], ref_b[1], **tol)

    # Streaming two-pass path, forced with small spatial tiles (2 tiles of 128).
    out_c = cam_module(x, gamma1, force_streaming=True, tile_n=128)
    jax.block_until_ready(out_c)
    assert jnp.allclose(out_c[0], ref_b[0], **tol)
    assert jnp.allclose(out_c[1], ref_b[1], **tol)

    print("KERNEL_OK")
</pallas_src>

<mosaic_0001>
module attributes {stable_mosaic.version = 11 : i64} {
  func.func @kernel(%arg0: i32, %arg1: memref<1xf32, #tpu.memory_space<smem>>, %arg2: memref<1x8x256xf32, #tpu.memory_space<vmem>>, %arg3: memref<1x8x256xf32, #tpu.memory_space<vmem>>, %arg4: memref<1x8x256xf32, #tpu.memory_space<vmem>>) attributes {dimension_semantics = [#tpu.dimension_semantics<parallel>], iteration_bounds = array<i64: 2>, scalar_prefetch = 0 : i64, scratch_operands = 0 : i64, tpu.core_type = #tpu.core_type<tc>, window_params = [{transform_indices = @transform_0, window_bounds = array<i64: 1>}, {transform_indices = @transform_1, window_bounds = array<i64: 1, 8, 256>}, {transform_indices = @transform_2, window_bounds = array<i64: 1, 8, 256>}, {transform_indices = @transform_3, window_bounds = array<i64: 1, 8, 256>}]} {
    %c0 = arith.constant 0 : index
    %c0_0 = arith.constant 0 : index
    %c0_1 = arith.constant 0 : index
    %0 = vector.load %arg2[%c0, %c0_0, %c0_1] : memref<1x8x256xf32, #tpu.memory_space<vmem>>, vector<1x8x256xf32>
    %1 = vector.shape_cast %0 : vector<1x8x256xf32> to vector<8x256xf32>
    %cst = arith.constant dense<0.000000e+00> : vector<8x8xf32>
    %2 = tpu.matmul %1, %1, %cst {dimension_numbers = #tpu.dot_dimension_numbers<[1], [1], [0], [0], [0, 0, 1, 0], [], []>} : vector<8x256xf32>, vector<8x256xf32>, vector<8x8xf32> -> vector<8x8xf32>
    %3 = tpu.iota {dimensions = array<i32: 1>} : vector<8x8xi32>
    %c4_i32 = arith.constant 4 : i32
    %4 = vector.broadcast %c4_i32 : i32 to vector<8x8xi32>
    %5 = arith.cmpi slt, %3, %4 : vector<8x8xi32>
    %cst_2 = arith.constant 0x7F800000 : f32
    %6 = vector.broadcast %cst_2 : f32 to vector<8x8xf32>
    %7 = arith.select %5, %2, %6 : vector<8x8xi1>, vector<8x8xf32>
    %cst_3 = arith.constant dense<0x7F800000> : vector<8xf32>
    %8 = vector.multi_reduction <minimumf>, %7, %cst_3 [1] : vector<8x8xf32> to vector<8xf32>
    %9 = vector.shape_cast %8 : vector<8xf32> to vector<8x1xf32>
    %10 = vector.broadcast %9 : vector<8x1xf32> to vector<8x8xf32>
    %11 = arith.subf %10, %7 : vector<8x8xf32>
    %12 = math.exp %11 : vector<8x8xf32>
    %cst_4 = arith.constant dense<0.000000e+00> : vector<8xf32>
    %13 = vector.multi_reduction <add>, %12, %cst_4 [1] : vector<8x8xf32> to vector<8xf32>
    %14 = vector.shape_cast %13 : vector<8xf32> to vector<8x1xf32>
    %15 = vector.broadcast %14 : vector<8x1xf32> to vector<8x8xf32>
    %16 = arith.divf %12, %15 : vector<8x8xf32>
    %cst_5 = arith.constant dense<0.000000e+00> : vector<8x256xf32>
    %17 = tpu.matmul %16, %1, %cst_5 {dimension_numbers = #tpu.dot_dimension_numbers<[1], [0], [0], [1], [0, 0, 1, 1], [], []>} : vector<8x8xf32>, vector<8x256xf32>, vector<8x256xf32> -> vector<8x256xf32>
    %c0_6 = arith.constant 0 : index
    %18 = memref.load %arg1[%c0_6] : memref<1xf32, #tpu.memory_space<smem>>
    %19 = vector.broadcast %18 : f32 to vector<8x256xf32>
    %20 = arith.mulf %19, %17 : vector<8x256xf32>
    %21 = arith.addf %20, %1 : vector<8x256xf32>
    %c0_7 = arith.constant 0 : index
    %c0_8 = arith.constant 0 : index
    %c0_9 = arith.constant 0 : index
    %22 = vector.load %arg3[%c0_7, %c0_8, %c0_9] : memref<1x8x256xf32, #tpu.memory_space<vmem>>, vector<1x8x256xf32>
    %23 = vector.shape_cast %22 : vector<1x8x256xf32> to vector<8x256xf32>
    %24 = vector.shape_cast %21 : vector<8x256xf32> to vector<1x8x256xf32>
    tpu.vector_store %arg3[%c0_7, %c0_8, %c0_9], %24 {strides = array<i32>} : memref<1x8x256xf32, #tpu.memory_space<vmem>>, vector<1x8x256xf32>,
    %c0_10 = arith.constant 0 : index
    %c0_11 = arith.constant 0 : index
    %c0_12 = arith.constant 0 : index
    %25 = vector.load %arg4[%c0_10, %c0_11, %c0_12] : memref<1x8x256xf32, #tpu.memory_space<vmem>>, vector<1x8x256xf32>
    %26 = vector.shape_cast %25 : vector<1x8x256xf32> to vector<8x256xf32>
    %27 = vector.shape_cast %17 : vector<8x256xf32> to vector<1x8x256xf32>
    tpu.vector_store %arg4[%c0_10, %c0_11, %c0_12], %27 {strides = array<i32>} : memref<1x8x256xf32, #tpu.memory_space<vmem>>, vector<1x8x256xf32>,
    return
  }
  func.func @transform_0(%arg0: i32) -> i32 {
    %c0_i32 = arith.constant 0 : i32
    %c0_i32_0 = arith.constant 0 : i32
    return %c0_i32 : i32
  }
  func.func @transform_1(%arg0: i32) -> (i32, i32, i32) {
    %c0_i32 = arith.constant 0 : i32
    %c0_i32_0 = arith.constant 0 : i32
    %c0_i32_1 = arith.constant 0 : i32
    return %arg0, %c0_i32, %c0_i32_0 : i32, i32, i32
  }
  func.func @transform_2(%arg0: i32) -> (i32, i32, i32) {
    %c0_i32 = arith.constant 0 : i32
    %c0_i32_0 = arith.constant 0 : i32
    %c0_i32_1 = arith.constant 0 : i32
    return %arg0, %c0_i32, %c0_i32_0 : i32, i32, i32
  }
  func.func @transform_3(%arg0: i32) -> (i32, i32, i32) {
    %c0_i32 = arith.constant 0 : i32
    %c0_i32_0 = arith.constant 0 : i32
    %c0_i32_1 = arith.constant 0 : i32
    return %arg0, %c0_i32, %c0_i32_0 : i32, i32, i32
  }
}

</mosaic_0001>

<llo_original>
// kernel: tpu_custom_call.1
$region0: #{tpu_custom_call.1}
  #allocation0 [shape = 'u32[]', space=smem, size = 0x4, offset = 0x4, fixed_abs, tag = 'smem constant byte address 0x4 - core index']
  #allocation1 [shape = 'u32[144,128]{1,0:T(1,128)}', space=vmem, size = 0x12000, scoped, tag = 'internal scratch']
  #allocation2 [shape = 'f32[1]{0:T(128)S(6)}', space=smem, size = 0x200, scoped, tag = 'scoped memory for tpu_custom_call.1']
  %s0 = inlined_call_operand.<no memory space> [shape: f32[1], index: 0, kind: input, shape index: {}]
  %s1 = inlined_call_operand.hbm [shape: f32[2,8,256], index: 1, kind: input, shape index: {}]
  %s2 = inlined_call_operand.hbm [shape: f32[2,8,256], index: 2, kind: output, shape index: {0}]
  %s3 = inlined_call_operand.hbm [shape: f32[2,8,256], index: 3, kind: output, shape index: {1}]
  %4 = xla_tuple %s2, %s3
  %s5 = sld [smem:[#allocation0]]
  $region53: #{tpu_custom_call.1} parent=0
    _
  %s7 = ssub.s32 1, %s5
  %s8 = scalar_select 0, %s7, %s5
  %9 = sst [smem:[#allocation2]] %s0
  $region1: #{tpu_custom_call.1} parent=0
    #allocation3 [shape = 'u8[16384]{0}', space=vmem, size = 0x4000, scoped, tag = 'input window, operand 1']
    #allocation4 [shape = 's32[2]{0}', space=sflag, size = 0x8, scoped, tag = 'scoped memory for tpu_custom_call.1']
    #allocation5 [shape = 's32[2]{0}', space=sflag, size = 0x8, scoped, tag = 'scoped memory for tpu_custom_call.1']
    #allocation6 [shape = 'u8[16384]{0}', space=vmem, size = 0x4000, scoped, tag = 'output window, operand 0']
    #allocation7 [shape = 'u8[16384]{0}', space=vmem, size = 0x4000, scoped, tag = 'output window, operand 1']
    #allocation8 [shape = 's32[2]{0}', space=sflag, size = 0x8, scoped, tag = 'scoped memory for tpu_custom_call.1']
    %10 = vsyncpa [#allocation4], 0
    %s11 = scalar_lea.sflag [#allocation4], 1
    %12 = vsyncpa %s11, 0
    %13 = vsyncpa [#allocation5], 0
    %s14 = scalar_lea.sflag [#allocation5], 1
    %15 = vsyncpa %s14, 0
    %16 = vsyncpa [#allocation8], 0
    %s17 = scalar_lea.sflag [#allocation8], 1
    %18 = vsyncpa %s17, 0
    loop: start=0, step=1, limit=4
    $region2: #{tpu_custom_call.1} parent=1 // loop_pre_header
      _
    $region3: #{tpu_custom_call.1} parent=1 // loop_header
      %s20 = sphi 0, %s24
      %p21 = scmp.ge.s32.totalorder %s20, 4
      %s28 = sphi 0, %s28
      %s30 = sphi 0, %s28
      %s31 = sphi 0, %s30
      %s45 = sphi 0, %s31
      %s51 = sphi 0, %s53
      %s54 = sphi 0, %s51
      %s55 = sphi 0, %s54
      %s71 = sphi 0, %s55
      %s77 = sphi 0, %s79
      %s80 = sphi 0, %s77
      %s81 = sphi 0, %s80
      %s97 = sphi 0, %s81
      %s103 = sphi 0, %s105
      %s106 = sphi 0, %s103
      %s107 = sphi 0, %s106
      %s123 = sphi 0, %s107
    $region4: #{tpu_custom_call.1} parent=1 // loop_header_branch
      %23 = sbr.rel (%p21) target = $region8
    $region5: #{tpu_custom_call.1} parent=1 // loop_body
      %s25 = ssub.s32 %s20, 1
      %s26 = ssub.s32 %s20, 2
      %s27 = sadd.s32 %s20, 1
      %s29 = sadd.s32 %s28, 1
      %p32 = scmp.eq.s32.totalorder %s20, 1
      %p33 = scmp.ne.s32.totalorder %s28, %s30
      %p34 = scmp.eq.s32.totalorder %s20, 0
      %p35 = por %p33, %p34
      %p36 = scmp.ne.s32.totalorder %s28, %s30
      %p37 = scmp.eq.s32.totalorder %s25, 1
      %p38 = por %p36, %p37
      %p39 = scmp.ne.s32.totalorder %s30, %s31
      %p40 = scmp.eq.s32.totalorder %s25, 0
      %p41 = por %p39, %p40
      %p42 = scmp.ne.s32.totalorder %s30, %s31
      %p43 = scmp.eq.s32.totalorder %s26, 1
      %p44 = por %p42, %p43
      %p46 = scmp.ne.s32.totalorder %s31, %s45
      %p47 = scmp.eq.s32.totalorder %s26, 0
      %p48 = por %p46, %p47
      %s49 = ssub.s32 %s20, %s27
      %p50 = scmp.eq.s32.totalorder %s49, 0
      %s52 = sadd.s32 %s51, 1
      %s53 = scalar_select %p50, %s51, %s52
      %p56 = pneg %p50
      %p57 = scmp.eq.s32.totalorder %s20, 1
      %p58 = por %p56, %p57
      %p59 = scmp.ne.s32.totalorder %s51, %s54
      %p60 = scmp.eq.s32.totalorder %s20, 0
      %p61 = por %p59, %p60
      %p62 = scmp.ne.s32.totalorder %s51, %s54
      %p63 = scmp.eq.s32.totalorder %s25, 1
      %p64 = por %p62, %p63
      %p65 = scmp.ne.s32.totalorder %s54, %s55
      %p66 = scmp.eq.s32.totalorder %s25, 0
      %p67 = por %p65, %p66
      %p68 = scmp.ne.s32.totalorder %s54, %s55
      %p69 = scmp.eq.s32.totalorder %s26, 1
      %p70 = por %p68, %p69
      %p72 = scmp.ne.s32.totalorder %s55, %s71
      %p73 = scmp.eq.s32.totalorder %s26, 0
      %p74 = por %p72, %p73
      %s75 = ssub.s32 %s20, %s27
      %p76 = scmp.eq.s32.totalorder %s75, 0
      %s78 = sadd.s32 %s77, 1
      %s79 = scalar_select %p76, %s77, %s78
      %p82 = pneg %p76
      %p83 = scmp.eq.s32.totalorder %s20, 1
      %p84 = por %p82, %p83
      %p85 = scmp.ne.s32.totalorder %s77, %s80
      %p86 = scmp.eq.s32.totalorder %s20, 0
      %p87 = por %p85, %p86
      %p88 = scmp.ne.s32.totalorder %s77, %s80
      %p89 = scmp.eq.s32.totalorder %s25, 1
      %p90 = por %p88, %p89
      %p91 = scmp.ne.s32.totalorder %s80, %s81
      %p92 = scmp.eq.s32.totalorder %s25, 0
      %p93 = por %p91, %p92
      %p94 = scmp.ne.s32.totalorder %s80, %s81
      %p95 = scmp.eq.s32.totalorder %s26, 1
      %p96 = por %p94, %p95
      %p98 = scmp.ne.s32.totalorder %s81, %s97
      %p99 = scmp.eq.s32.totalorder %s26, 0
      %p100 = por %p98, %p99
      %s101 = ssub.s32 %s20, %s27
      %p102 = scmp.eq.s32.totalorder %s101, 0
      %s104 = sadd.s32 %s103, 1
      %s105 = scalar_select %p102, %s103, %s104
      %p108 = pneg %p102
      %p109 = scmp.eq.s32.totalorder %s20, 1
      %p110 = por %p108, %p109
      %p111 = scmp.ne.s32.totalorder %s103, %s106
      %p112 = scmp.eq.s32.totalorder %s20, 0
      %p113 = por %p111, %p112
      %p114 = scmp.ne.s32.totalorder %s103, %s106
      %p115 = scmp.eq.s32.totalorder %s25, 1
      %p116 = por %p114, %p115
      %p117 = scmp.ne.s32.totalorder %s106, %s107
      %p118 = scmp.eq.s32.totalorder %s25, 0
      %p119 = por %p117, %p118
      %p120 = scmp.ne.s32.totalorder %s106, %s107
      %p121 = scmp.eq.s32.totalorder %s26, 1
      %p122 = por %p120, %p121
      %p124 = scmp.ne.s32.totalorder %s107, %s123
      %p125 = scmp.eq.s32.totalorder %s26, 0
      %p126 = por %p124, %p125
      %p127 = scmp.le.s32.totalorder 1, %s20
      %p128 = scmp.lt.s32.totalorder %s20, 3
      %p129 = pnand %p127, %p128
      %p130 = pneg %p129
      // Predicated region
      $region9: #{tpu_custom_call.1} parent=5 // pred_check
        _
      $region10: #{tpu_custom_call.1} parent=5 // pred_check_branch
        %132 = sbr.rel (%p129) target = $region12
      $region11: #{tpu_custom_call.1} parent=5 // pred_region
        %s133 = ssub.s32 %s20, 1
        // Predicated region
        $region13: #{tpu_custom_call.1} parent=11 // pred_check
          %p134 = pneg %p41
        $region14: #{tpu_custom_call.1} parent=11 // pred_check_branch
          %136 = sbr.rel (%p134) target = $region16
        $region15: #{tpu_custom_call.1} parent=11 // pred_region
          _
        $region16: #{tpu_custom_call.1} parent=11 // pred_fallthru
          _
      $region12: #{tpu_custom_call.1} parent=5 // pred_fallthru
        _
      %p137 = scmp.lt.s32.totalorder %s20, 2
      // Predicated region
      $region17: #{tpu_custom_call.1} parent=5 // pred_check
        %p138 = pneg %p137
      $region18: #{tpu_custom_call.1} parent=5 // pred_check_branch
        %140 = sbr.rel (%p138) target = $region20
      $region19: #{tpu_custom_call.1} parent=5 // pred_region
        // Predicated region
        $region21: #{tpu_custom_call.1} parent=19 // pred_check
          %p141 = pneg %p61
        $region22: #{tpu_custom_call.1} parent=19 // pred_check_branch
          %143 = sbr.rel (%p141) target = $region24
        $region23: #{tpu_custom_call.1} parent=19 // pred_region
          %s144 = sand.u32 %s51, 1
          %s145 = scalar_lea.sflag [#allocation4], %s144
          %s146 = sand.u32 %s51, 1
          %s147 = smul.addr %s146, 16
          %s148 = scalar_lea.vmem [#allocation3], %s147
          %s150 = ssub.s32 256, 256
          %151 = vsyncadd %s145, %s150
          %s152 = smul.addr %s20, 2
          %s153 = smul.addr %s152, 128
          %s154 = scalar_lea.hbm %s1, %s153
          %s156 = sshll.u32 %s148, 4
          %s157 = int_to_ptr.vmem [resolvable:$true] %s156
          %159 = dma.hbm_to_vmem [thread:$0]  %s154, 256, %s157, %s145
        $region24: #{tpu_custom_call.1} parent=19 // pred_fallthru
          _
      $region20: #{tpu_custom_call.1} parent=5 // pred_fallthru
        _
      %p160 = scmp.le.s32.totalorder 1, %s20
      %p161 = scmp.lt.s32.totalorder %s20, 3
      %p162 = pnand %p160, %p161
      %p163 = pneg %p162
      // Predicated region
      $region25: #{tpu_custom_call.1} parent=5 // pred_check
        _
      $region26: #{tpu_custom_call.1} parent=5 // pred_check_branch
        %165 = sbr.rel (%p162) target = $region28
      $region27: #{tpu_custom_call.1} parent=5 // pred_region
        %s166 = ssub.s32 %s20, 1
        %s167 = sand.u32 %s54, 1
        %s168 = scalar_lea.sflag [#allocation4], %s167
        %s169 = sand.u32 %s54, 1
        %s170 = smul.addr %s169, 16
        %s171 = scalar_lea.vmem [#allocation3], %s170
        // Predicated region
        $region29: #{tpu_custom_call.1} parent=27 // pred_check
          %p172 = pneg %p67
        $region30: #{tpu_custom_call.1} parent=27 // pred_check_branch
          %174 = sbr.rel (%p172) target = $region32
        $region31: #{tpu_custom_call.1} parent=27 // pred_region
          %175 = dma.done %s168, 256
        $region32: #{tpu_custom_call.1} parent=27 // pred_fallthru
          _
        %p176 = pneg %p41
        %p177 = pneg %p38
        %s178 = sand.u32 %s54, 1
        %s179 = scalar_lea.sflag [#allocation4], %s178
        %s180 = sand.u32 %s54, 1
        %s181 = smul.addr %s180, 16
        %s182 = scalar_lea.vmem [#allocation3], %s181
        %p183 = pneg %p67
        %p184 = pneg %p64
        %p185 = pneg %p93
        %p186 = pneg %p90
        %s187 = sand.u32 %s80, 1
        %s188 = scalar_lea.sflag [#allocation5], %s187
        %s189 = sand.u32 %s80, 1
        %s190 = smul.addr %s189, 16
        %s191 = scalar_lea.vmem [#allocation6], %s190
        %p192 = pneg %p119
        %p193 = pneg %p116
        %s194 = sand.u32 %s106, 1
        %s195 = scalar_lea.sflag [#allocation8], %s194
        %s196 = sand.u32 %s106, 1
        %s197 = smul.addr %s196, 16
        %s198 = scalar_lea.vmem [#allocation7], %s197
        %v199 = vld [vmem:[%s171] sm:$0xff]
        %v200 = vld [vmem:[%s171 + $0x8] sm:$0xff]
        %201 = vmatprep.subr.mxu0 0.0
        %202 = vmatpush1.xpose.msra.mxu0 0.0
        %203 = vmatprep.subr.mxu0 0.0
        %204 = vmatpush1.xpose.msra.mxu0 0.0
        %205 = vmatprep.subr.mxu0 0.0
        %206 = vmatpush1.xpose.msra.mxu0 0.0
        %207 = vmatprep.subr.mxu0 0.0
        %208 = vmatpush1.xpose.msra.mxu0 0.0
        %209 = vmatprep.subr.mxu0 0.0
        %210 = vmatpush1.xpose.msra.mxu0 0.0
        %211 = vmatprep.subr.mxu0 0.0
        %212 = vmatpush1.xpose.msra.mxu0 0.0
        %213 = vmatprep.subr.mxu0 0.0
        %214 = vmatpush1.xpose.msra.mxu0 0.0
        %215 = vmatprep.subr.mxu0 0.0
        %216 = vmatpush1.xpose.msra.mxu0 0.0
        %217 = vmatprep.subr.mxu0 0.0
        %218 = vmatpush1.xpose.msra.mxu0 0.0
        %219 = vmatprep.subr.mxu0 0.0
        %220 = vmatpush1.xpose.msra.mxu0 0.0
        %221 = vmatprep.subr.mxu0 0.0
        %222 = vmatpush1.xpose.msra.mxu0 0.0
        %223 = vmatprep.subr.mxu0 0.0
        %224 = vmatpush1.xpose.msra.mxu0 0.0
        %225 = vmatprep.subr.mxu0 0.0
        %226 = vmatpush1.xpose.msra.mxu0 0.0
        %227 = vmatprep.subr.mxu0 0.0
        %228 = vmatpush1.xpose.msra.mxu0 0.0
        %229 = vmatprep.subr.mxu0 0.0
        %230 = vmatpush1.xpose.msra.mxu0 0.0
        %231 = vmatprep.subr.mxu0 %v200
        %232 = vmatpush1.xpose.msra.mxu0 %v199
        %233 = vmatprep.subr.mxu0 0.0
        %234 = vmatpush2.xpose.msra.mxu0 0.0
        %235 = vmatprep.subr.mxu0 0.0
        %236 = vmatpush2.xpose.msra.mxu0 0.0
        %237 = vmatprep.subr.mxu0 0.0
        %238 = vmatpush2.xpose.msra.mxu0 0.0
        %239 = vmatprep.subr.mxu0 0.0
        %240 = vmatpush2.xpose.msra.mxu0 0.0
        %241 = vmatprep.subr.mxu0 0.0
        %242 = vmatpush2.xpose.msra.mxu0 0.0
        %243 = vmatprep.subr.mxu0 0.0
        %244 = vmatpush2.xpose.msra.mxu0 0.0
        %245 = vmatprep.subr.mxu0 0.0
        %246 = vmatpush2.xpose.msra.mxu0 0.0
        %247 = vmatprep.subr.mxu0 0.0
        %248 = vmatpush2.xpose.msra.mxu0 0.0
        %249 = vmatprep.subr.mxu0 0.0
        %250 = vmatpush2.xpose.msra.mxu0 0.0
        %251 = vmatprep.subr.mxu0 0.0
        %252 = vmatpush2.xpose.msra.mxu0 0.0
        %253 = vmatprep.subr.mxu0 0.0
        %254 = vmatpush2.xpose.msra.mxu0 0.0
        %255 = vmatprep.subr.mxu0 0.0
        %256 = vmatpush2.xpose.msra.mxu0 0.0
        %257 = vmatprep.subr.mxu0 0.0
        %258 = vmatpush2.xpose.msra.mxu0 0.0
        %259 = vmatprep.subr.mxu0 0.0
        %260 = vmatpush2.xpose.msra.mxu0 0.0
        %261 = vmatprep.subr.mxu0 0.0
        %262 = vmatpush2.xpose.msra.mxu0 0.0
        %263 = vmatprep.subr.mxu0 0.0
        %264 = vmatpush2.xpose.msra.mxu0 0.0
        %265 = vmatprep.mubr.f32.mxu0 %v200
        %266 = vmatmul.mubr.f32.gmra.mxu0 %v199
        %v267 = vpop.f32.mrf.mxu0
        %v268 = vadd.f32 0.0, %v267
        %v269 = vpop.f32.mrf.mxu0
        %270 = vdwg.mxu0
        %v271 = vlaneseq
        %v272 = vand.u32 %v271, 127
        %vm273 = vcmp.lt.s32.totalorder %v272, 4
        %v274 = vsel %vm273, %v268, inf
        %vm275 = vcmask 64512
        %v276 = vsel %vm275, %v274, inf
        %277 = vmin.xlane.f32.xlu0 %v276
        %v278 = vpop.xlane.xlu0 %277
        %v279 = vsub.f32 %v278, %v274
        %v280 = vmul.f32 %v279, 1.442695
        %v281 = vpow.pop %v280
        %v282 = vsel %vm275, %v281, 0.0
        %283 = vadd.xlane.f32.xlu0 %v282
        %v284 = vpop.xlane.xlu0 %283
        %v285 = vrcp.pop %v284
        %v286 = vmul.f32 %v281, %v285
        %v288 = vsel %vm275, %v286, 0
        %290 = vmatprep.subr.mxu0 0.0
        %291 = vmatpush1.msra.mxu0 0.0
        %292 = vmatprep.subr.mxu0 0.0
        %293 = vmatpush1.msra.mxu0 0.0
        %294 = vmatprep.subr.mxu0 0.0
        %295 = vmatpush1.msra.mxu0 0.0
        %296 = vmatprep.subr.mxu0 0.0
        %297 = vmatpush1.msra.mxu0 0.0
        %298 = vmatprep.subr.mxu0 0.0
        %299 = vmatpush1.msra.mxu0 0.0
        %300 = vmatprep.subr.mxu0 0.0
        %301 = vmatpush1.msra.mxu0 0.0
        %302 = vmatprep.subr.mxu0 0.0
        %303 = vmatpush1.msra.mxu0 0.0
        %304 = vmatprep.subr.mxu0 0.0
        %305 = vmatpush1.msra.mxu0 0.0
        %306 = vmatprep.subr.mxu0 0.0
        %307 = vmatpush1.msra.mxu0 0.0
        %308 = vmatprep.subr.mxu0 0.0
        %309 = vmatpush1.msra.mxu0 0.0
        %310 = vmatprep.subr.mxu0 0.0
        %311 = vmatpush1.msra.mxu0 0.0
        %312 = vmatprep.subr.mxu0 0.0
        %313 = vmatpush1.msra.mxu0 0.0
        %314 = vmatprep.subr.mxu0 0.0
        %315 = vmatpush1.msra.mxu0 0.0
        %316 = vmatprep.subr.mxu0 0.0
        %317 = vmatpush1.msra.mxu0 0.0
        %318 = vmatprep.subr.mxu0 0.0
        %319 = vmatpush1.msra.mxu0 0.0
        %320 = vmatprep.subr.mxu0 %v200
        %321 = vmatpush1.msra.mxu0 %v199
        %322 = vmatprep.subr.mxu0 0.0
        %323 = vmatpush2.msra.mxu0 0.0
        %324 = vmatprep.subr.mxu0 0.0
        %325 = vmatpush2.msra.mxu0 0.0
        %326 = vmatprep.subr.mxu0 0.0
        %327 = vmatpush2.msra.mxu0 0.0
        %328 = vmatprep.subr.mxu0 0.0
        %329 = vmatpush2.msra.mxu0 0.0
        %330 = vmatprep.subr.mxu0 0.0
        %331 = vmatpush2.msra.mxu0 0.0
        %332 = vmatprep.subr.mxu0 0.0
        %333 = vmatpush2.msra.mxu0 0.0
        %334 = vmatprep.subr.mxu0 0.0
        %335 = vmatpush2.msra.mxu0 0.0
        %336 = vmatprep.subr.mxu0 0.0
        %337 = vmatpush2.msra.mxu0 0.0
        %338 = vmatprep.subr.mxu0 0.0
        %339 = vmatpush2.msra.mxu0 0.0
        %340 = vmatprep.subr.mxu0 0.0
        %341 = vmatpush2.msra.mxu0 0.0
        %342 = vmatprep.subr.mxu0 0.0
        %343 = vmatpush2.msra.mxu0 0.0
        %344 = vmatprep.subr.mxu0 0.0
        %345 = vmatpush2.msra.mxu0 0.0
        %346 = vmatprep.subr.mxu0 0.0
        %347 = vmatpush2.msra.mxu0 0.0
        %348 = vmatprep.subr.mxu0 0.0
        %349 = vmatpush2.msra.mxu0 0.0
        %350 = vmatprep.subr.mxu0 0.0
        %351 = vmatpush2.msra.mxu0 0.0
        %352 = vmatprep.subr.mxu0 0.0
        %353 = vmatpush2.msra.mxu0 0.0
        %354 = vmatprep.mubr.f32.mxu0 0.0
        %355 = vmatmul.mubr.f32.gmra.mxu0 %v288
        %v356 = vpop.f32.mrf.mxu0
        %v357 = vadd.f32 0.0, %v356
        %v358 = vpop.f32.mrf.mxu0
        %v359 = vadd.f32 0.0, %v358
        %360 = vdwg.mxu0
        %s361 = sld [smem:[#allocation2]]
        %v362 = vstv %s361
        %v363 = vmul.f32 %v362, %v357
        %v364 = vmul.f32 %v362, %v359
        %v365 = vadd.f32 %v363, %v199
        %v366 = vadd.f32 %v364, %v200
        %367 = vst [vmem:[%s191] sm:$0xff] %v365
        %368 = vst [vmem:[%s191 + $0x8] sm:$0xff] %v366
        %369 = vst [vmem:[%s198] sm:$0xff] %v357
        %370 = vst [vmem:[%s198 + $0x8] sm:$0xff] %v359
        %s371 = sand.u32 %s80, 1
        %s372 = scalar_lea.sflag [#allocation5], %s371
        %s373 = sand.u32 %s80, 1
        %s374 = smul.addr %s373, 16
        %s375 = scalar_lea.vmem [#allocation6], %s374
        %s376 = sand.u32 %s106, 1
        %s377 = scalar_lea.sflag [#allocation8], %s376
        %s378 = sand.u32 %s106, 1
        %s379 = smul.addr %s378, 16
        %s380 = scalar_lea.vmem [#allocation7], %s379
        // Predicated region
        $region33: #{tpu_custom_call.1} parent=27 // pred_check
          %p381 = pneg %p90
        $region34: #{tpu_custom_call.1} parent=27 // pred_check_branch
          %383 = sbr.rel (%p381) target = $region36
        $region35: #{tpu_custom_call.1} parent=27 // pred_region
          %s385 = ssub.s32 256, 256
          %386 = vsyncadd %s372, %s385
          %s387 = smul.addr %s25, 2
          %s388 = smul.addr %s387, 128
          %s389 = scalar_lea.hbm %s2, %s388
          %s391 = sshll.u32 %s375, 4
          %s392 = int_to_ptr.vmem [resolvable:$true] %s391
          %394 = dma.vmem_to_hbm [thread:$0]  %s392, 256, %s389, %s372
        $region36: #{tpu_custom_call.1} parent=27 // pred_fallthru
          _
        // Predicated region
        $region37: #{tpu_custom_call.1} parent=27 // pred_check
          %p395 = pneg %p116
        $region38: #{tpu_custom_call.1} parent=27 // pred_check_branch
          %397 = sbr.rel (%p395) target = $region40
        $region39: #{tpu_custom_call.1} parent=27 // pred_region
          %s399 = ssub.s32 256, 256
          %400 = vsyncadd %s377, %s399
          %s401 = smul.addr %s25, 2
          %s402 = smul.addr %s401, 128
          %s403 = scalar_lea.hbm %s3, %s402
          %s405 = sshll.u32 %s380, 4
          %s406 = int_to_ptr.vmem [resolvable:$true] %s405
          %408 = dma.vmem_to_hbm [thread:$0]  %s406, 256, %s403, %s377
        $region40: #{tpu_custom_call.1} parent=27 // pred_fallthru
          _
      $region28: #{tpu_custom_call.1} parent=5 // pred_fallthru
        _
      %p409 = scmp.le.s32.totalorder 2, %s20
      // Predicated region
      $region41: #{tpu_custom_call.1} parent=5 // pred_check
        %p410 = pneg %p409
      $region42: #{tpu_custom_call.1} parent=5 // pred_check_branch
        %412 = sbr.rel (%p410) target = $region44
      $region43: #{tpu_custom_call.1} parent=5 // pred_region
        %s413 = ssub.s32 %s20, 2
        // Predicated region
        $region45: #{tpu_custom_call.1} parent=43 // pred_check
          %p414 = pneg %p96
        $region46: #{tpu_custom_call.1} parent=43 // pred_check_branch
          %416 = sbr.rel (%p414) target = $region48
        $region47: #{tpu_custom_call.1} parent=43 // pred_region
          %s417 = sand.u32 %s81, 1
          %s418 = scalar_lea.sflag [#allocation5], %s417
          %s419 = sand.u32 %s81, 1
          %s420 = smul.addr %s419, 16
          %s421 = scalar_lea.vmem [#allocation6], %s420
          %422 = dma.done %s418, 256
        $region48: #{tpu_custom_call.1} parent=43 // pred_fallthru
          _
        // Predicated region
        $region49: #{tpu_custom_call.1} parent=43 // pred_check
          %p423 = pneg %p122
        $region50: #{tpu_custom_call.1} parent=43 // pred_check_branch
          %425 = sbr.rel (%p423) target = $region52
        $region51: #{tpu_custom_call.1} parent=43 // pred_region
          %s426 = sand.u32 %s107, 1
          %s427 = scalar_lea.sflag [#allocation8], %s426
          %s428 = sand.u32 %s107, 1
          %s429 = smul.addr %s428, 16
          %s430 = scalar_lea.vmem [#allocation7], %s429
          %431 = dma.done %s427, 256
        $region52: #{tpu_custom_call.1} parent=43 // pred_fallthru
          _
      $region44: #{tpu_custom_call.1} parent=5 // pred_fallthru
        _
    $region6: #{tpu_custom_call.1} parent=1 // loop_footer
      %s24 = sadd.s32 1, %s20
    $region7: #{tpu_custom_call.1} parent=1 // loop_footer_branch
      %19 = sbr.rel target = $region3
    $region8: #{tpu_custom_call.1} parent=1 // loop_exit
      _
    %432 = vsyncpa [#allocation4], 1
    %s433 = scalar_lea.sflag [#allocation4], 1
    %434 = vsyncpa %s433, 1
    %435 = vsyncpa [#allocation5], 1
    %s436 = scalar_lea.sflag [#allocation5], 1
    %437 = vsyncpa %s436, 1
    %438 = vsyncpa [#allocation8], 1
    %s439 = scalar_lea.sflag [#allocation8], 1
    %440 = vsyncpa %s439, 1

</llo_original>
